<compile_context>
chip_gen: v5e
topology: v5e:2x2
jax: 0.10.0
libtpu: 0.0.40
codegen_flags: <defaults>
</compile_context>

<pallas_src>
import functools

import jax
import jax.numpy as jnp
from jax import lax
from jax.experimental import pallas as pl
from jax.experimental.pallas import tpu as pltpu


def _round_up(a: int, b: int) -> int:
    return (a + b - 1) // b * b


def _num_tensorcores() -> int:
    # Only v7x has 2 TensorCores per chip that shard a "parallel" grid axis.
    try:
        kind = jax.devices()[0].device_kind.lower()
    except Exception:
        return 1
    return 2 if ("v7" in kind or "7x" in kind) else 1


def fuzzify_kernel(x_ref, mu_ref, coef_ref, o_ref, *, num_in, maxmfs):
    # x_ref:    (num_in, tb)  input batch tile, batch on the lane axis
    # mu_ref:   (F, 1)        MF centers (1e20 on padded slots)
    # coef_ref: (F, 1)        -0.5 / sigma^2 (-1.0 on padded slots)
    # o_ref:    (F, tb)       memberships, F = num_in * maxmfs, lane-dense
    F, tb = o_ref.shape

    # Replicate x rows onto the F output rows: x_rep[i*maxmfs + j, :] = x[i, :].
    # Sublane broadcast per variable + one (cmp, select) per extra variable;
    # every op acts on an aligned, full (F, tb) tile (no unaligned concat or
    # sub-block stores, no one-hot multiply-accumulate).
    x_rep = jnp.broadcast_to(x_ref[pl.ds(0, 1), :], (F, tb))
    if num_in > 1:
        row = lax.broadcasted_iota(jnp.int32, (F, tb), 0)
        for i in range(1, num_in):
            xi = jnp.broadcast_to(x_ref[pl.ds(i, 1), :], (F, tb))
            x_rep = jnp.where(row >= i * maxmfs, xi, x_rep)

    d = x_rep - mu_ref[...]
    # Padded slots carry (mu=1e20, coef=-1): coef * d*d == -inf -> exp == 0.
    o_ref[...] = jnp.exp(coef_ref[...] * (d * d)).astype(o_ref.dtype)


def fuzzify_layer(x, mu, sigma, mask, *, tb=8192, out_dtype=jnp.float32,
                  transposed_output=False):
    """Pallas forward of the fuzzification layer.

    x:     (B, num_in) float32
    mu:    (num_in, maxmfs)   Gaussian MF centers
    sigma: (num_in, maxmfs)   Gaussian MF widths
    mask:  (num_in, maxmfs)   1.0 for real MFs, 0.0 for pad_to() slots
    Returns (B, num_in, maxmfs); with transposed_output=True returns the raw
    lane-dense (num_in*maxmfs, B) slab (natural layout for a fused rule product).
    """
    B, num_in = x.shape
    num_in_p, maxmfs = mu.shape
    assert num_in_p == num_in
    F = num_in * maxmfs

    # ---- parameter hoisting (tiny arrays, runs once in XLA) ----------------
    mask_f = mask.astype(jnp.float32)
    sigma_safe = jnp.maximum(jnp.abs(sigma.astype(jnp.float32)), 1e-12)  # sigma==0 insurance
    coef = -0.5 / (sigma_safe * sigma_safe)
    big = jnp.float32(1e20)
    mu_eff = jnp.where(mask_f > 0, mu.astype(jnp.float32), big).reshape(F, 1)
    coef_eff = jnp.where(mask_f > 0, coef, jnp.float32(-1.0)).reshape(F, 1)

    x_t = x.astype(jnp.float32).T                       # (num_in, B)

    # ---- batch-on-lanes tiling ---------------------------------------------
    tb_eff = max(128, tb - tb % 128)                    # multiple of 128
    if _num_tensorcores() >= 2 and B > 256:
        # v7x: keep >= 2 "parallel" steps so both TensorCores get work.
        tb_eff = min(tb_eff, _round_up(pl.cdiv(B, 2), 128))
    if B <= tb_eff:
        tb_eff = B                                      # single full-extent block
    grid = (pl.cdiv(B, tb_eff),)                        # ragged tail masked by Pallas

    kernel = functools.partial(fuzzify_kernel, num_in=num_in, maxmfs=maxmfs)

    out_t = pl.pallas_call(
        kernel,
        out_shape=jax.ShapeDtypeStruct((F, B), out_dtype),
        grid_spec=pltpu.PrefetchScalarGridSpec(
            num_scalar_prefetch=0,
            grid=grid,
            in_specs=[
                pl.BlockSpec((num_in, tb_eff), lambda b: (0, b)),   # x (transposed)
                pl.BlockSpec((F, 1), lambda b: (0, 0)),             # mu
                pl.BlockSpec((F, 1), lambda b: (0, 0)),             # coef
            ],
            out_specs=pl.BlockSpec((F, tb_eff), lambda b: (0, b)),
        ),
        compiler_params=pltpu.CompilerParams(
            dimension_semantics=("parallel",)),
    )(x_t, mu_eff, coef_eff)

    if transposed_output:
        return out_t                                    # (F, B)
    # (F, B) -> (B, num_in, maxmfs): cheap layout plumbing for module parity.
    return out_t.T.reshape(B, num_in, maxmfs)


def reference(x, mu, sigma, mask):
    d = x[:, :, None] - mu[None, :, :]
    y = jnp.exp(-(d * d) / (2.0 * sigma[None] ** 2))
    return y * mask[None, :, :]


if __name__ == "__main__":
    key = jax.random.PRNGKey(0)
    B, num_in, maxmfs = 16, 4, 5          # small, consistent with the module

    kx, kmu, ksig = jax.random.split(key, 3)
    x = jax.random.normal(kx, (B, num_in), dtype=jnp.float32)

    # Deterministic parameters of the per-variable Gaussian MFs.
    mu = jax.random.normal(kmu, (num_in, maxmfs), dtype=jnp.float32)
    sigma = 0.5 + jax.random.uniform(ksig, (num_in, maxmfs), dtype=jnp.float32)

    # Simulate pad_to(maxmfs): variables have [5, 3, 4, 5] real MFs.
    num_mfs_per_var = jnp.array([5, 3, 4, 5], dtype=jnp.int32)
    mask = (jnp.arange(maxmfs)[None, :] < num_mfs_per_var[:, None]).astype(jnp.float32)

    y = jax.block_until_ready(fuzzify_layer(x, mu, sigma, mask))
    y_ref = reference(x, mu, sigma, mask)
    assert y.shape == (B, num_in, maxmfs)
    assert jnp.allclose(y, y_ref, atol=1e-5, rtol=1e-5)

    # Multi-tile path with a ragged tail (exercises cdiv grid + Pallas masking).
    B2 = 300
    x2 = jax.random.normal(jax.random.PRNGKey(1), (B2, num_in), dtype=jnp.float32)
    y2 = jax.block_until_ready(fuzzify_layer(x2, mu, sigma, mask, tb=128))
    assert y2.shape == (B2, num_in, maxmfs)
    assert jnp.allclose(y2, reference(x2, mu, sigma, mask), atol=1e-5, rtol=1e-5)

    print("KERNEL_OK")
</pallas_src>

<mosaic_0001>
module attributes {stable_mosaic.version = 11 : i64} {
  func.func @fuzzify_kernel(%arg0: i32, %arg1: memref<4x16xf32, #tpu.memory_space<vmem>>, %arg2: memref<20x1xf32, #tpu.memory_space<vmem>>, %arg3: memref<20x1xf32, #tpu.memory_space<vmem>>, %arg4: memref<20x16xf32, #tpu.memory_space<vmem>>) attributes {dimension_semantics = [#tpu.dimension_semantics<parallel>], iteration_bounds = array<i64: 1>, scalar_prefetch = 0 : i64, scratch_operands = 0 : i64, tpu.core_type = #tpu.core_type<tc>, window_params = [{transform_indices = @transform_0, window_bounds = array<i64: 4, 16>}, {pipeline_mode = #tpu.pipeline_mode<synchronous>, transform_indices = @transform_1, window_bounds = array<i64: 20, 1>}, {pipeline_mode = #tpu.pipeline_mode<synchronous>, transform_indices = @transform_2, window_bounds = array<i64: 20, 1>}, {transform_indices = @transform_3, window_bounds = array<i64: 20, 16>}]} {
    %c0 = arith.constant 0 : index
    %c0_0 = arith.constant 0 : index
    %0 = vector.load %arg1[%c0, %c0_0] : memref<4x16xf32, #tpu.memory_space<vmem>>, vector<1x16xf32>
    %1 = vector.shape_cast %0 : vector<1x16xf32> to vector<1x16xf32>
    %2 = vector.broadcast %1 : vector<1x16xf32> to vector<20x16xf32>
    %3 = tpu.iota {dimensions = array<i32: 0>} : vector<20x16xi32>
    %c1 = arith.constant 1 : index
    %c0_1 = arith.constant 0 : index
    %4 = vector.load %arg1[%c1, %c0_1] : memref<4x16xf32, #tpu.memory_space<vmem>>, vector<1x16xf32>
    %5 = vector.shape_cast %4 : vector<1x16xf32> to vector<1x16xf32>
    %6 = vector.broadcast %5 : vector<1x16xf32> to vector<20x16xf32>
    %c5_i32 = arith.constant 5 : i32
    %7 = vector.broadcast %c5_i32 : i32 to vector<20x16xi32>
    %8 = arith.cmpi sge, %3, %7 : vector<20x16xi32>
    %9 = arith.select %8, %6, %2 : vector<20x16xi1>, vector<20x16xf32>
    %c2 = arith.constant 2 : index
    %c0_2 = arith.constant 0 : index
    %10 = vector.load %arg1[%c2, %c0_2] : memref<4x16xf32, #tpu.memory_space<vmem>>, vector<1x16xf32>
    %11 = vector.shape_cast %10 : vector<1x16xf32> to vector<1x16xf32>
    %12 = vector.broadcast %11 : vector<1x16xf32> to vector<20x16xf32>
    %c10_i32 = arith.constant 10 : i32
    %13 = vector.broadcast %c10_i32 : i32 to vector<20x16xi32>
    %14 = arith.cmpi sge, %3, %13 : vector<20x16xi32>
    %15 = arith.select %14, %12, %9 : vector<20x16xi1>, vector<20x16xf32>
    %c3 = arith.constant 3 : index
    %c0_3 = arith.constant 0 : index
    %16 = vector.load %arg1[%c3, %c0_3] : memref<4x16xf32, #tpu.memory_space<vmem>>, vector<1x16xf32>
    %17 = vector.shape_cast %16 : vector<1x16xf32> to vector<1x16xf32>
    %18 = vector.broadcast %17 : vector<1x16xf32> to vector<20x16xf32>
    %c15_i32 = arith.constant 15 : i32
    %19 = vector.broadcast %c15_i32 : i32 to vector<20x16xi32>
    %20 = arith.cmpi sge, %3, %19 : vector<20x16xi32>
    %21 = arith.select %20, %18, %15 : vector<20x16xi1>, vector<20x16xf32>
    %c0_4 = arith.constant 0 : index
    %c0_5 = arith.constant 0 : index
    %22 = vector.load %arg2[%c0_4, %c0_5] : memref<20x1xf32, #tpu.memory_space<vmem>>, vector<20x1xf32>
    %23 = vector.broadcast %22 : vector<20x1xf32> to vector<20x16xf32>
    %24 = arith.subf %21, %23 : vector<20x16xf32>
    %c0_6 = arith.constant 0 : index
    %c0_7 = arith.constant 0 : index
    %25 = vector.load %arg3[%c0_6, %c0_7] : memref<20x1xf32, #tpu.memory_space<vmem>>, vector<20x1xf32>
    %26 = arith.mulf %24, %24 : vector<20x16xf32>
    %27 = vector.broadcast %25 : vector<20x1xf32> to vector<20x16xf32>
    %28 = arith.mulf %27, %26 : vector<20x16xf32>
    %29 = math.exp %28 : vector<20x16xf32>
    %c0_8 = arith.constant 0 : index
    %c0_9 = arith.constant 0 : index
    %30 = vector.load %arg4[%c0_8, %c0_9] : memref<20x16xf32, #tpu.memory_space<vmem>>, vector<20x16xf32>
    tpu.vector_store %arg4[%c0_8, %c0_9], %29 {strides = array<i32>} : memref<20x16xf32, #tpu.memory_space<vmem>>, vector<20x16xf32>,
    return
  }
  func.func @transform_0(%arg0: i32) -> (i32, i32) {
    %c0_i32 = arith.constant 0 : i32
    %c0_i32_0 = arith.constant 0 : i32
    return %c0_i32, %arg0 : i32, i32
  }
  func.func @transform_1(%arg0: i32) -> (i32, i32) {
    %c0_i32 = arith.constant 0 : i32
    %c0_i32_0 = arith.constant 0 : i32
    %c0_i32_1 = arith.constant 0 : i32
    return %c0_i32, %c0_i32_0 : i32, i32
  }
  func.func @transform_2(%arg0: i32) -> (i32, i32) {
    %c0_i32 = arith.constant 0 : i32
    %c0_i32_0 = arith.constant 0 : i32
    %c0_i32_1 = arith.constant 0 : i32
    return %c0_i32, %c0_i32_0 : i32, i32
  }
  func.func @transform_3(%arg0: i32) -> (i32, i32) {
    %c0_i32 = arith.constant 0 : i32
    %c0_i32_0 = arith.constant 0 : i32
    return %c0_i32, %arg0 : i32, i32
  }
}

</mosaic_0001>

<llo_original>
// kernel: tpu_custom_call.1
$region0: #{tpu_custom_call.1}
  #allocation0 [shape = 'u32[]', space=smem, size = 0x4, offset = 0x4, fixed_abs, tag = 'smem constant byte address 0x4 - core index']
  #allocation1 [shape = 'u32[72,128]{1,0:T(1,128)}', space=vmem, size = 0x9000, scoped, tag = 'internal scratch']
  %s0 = inlined_call_operand.vmem [shape: f32[4,16], index: 0, kind: input, shape index: {}]
  %s1 = inlined_call_operand.vmem [shape: f32[20,1], index: 1, kind: input, shape index: {}]
  %s2 = inlined_call_operand.vmem [shape: f32[20,1], index: 2, kind: input, shape index: {}]
  %s3 = inlined_call_operand.vmem [shape: f32[20,16], index: 3, kind: output, shape index: {}]
  %s4 = sld [smem:[#allocation0]]
  $region22: #{tpu_custom_call.1} parent=0
    _
  %s6 = ssub.s32 1, %s4
  %s7 = scalar_select 0, %s6, %s4
  // Predicated region
  $region2: #{tpu_custom_call.1} parent=0 // pred_check
    _
  $region3: #{tpu_custom_call.1} parent=0 // pred_check_branch
    %9 = sbr.rel (0) target = $region5
  $region4: #{tpu_custom_call.1} parent=0 // pred_region
    _
  $region5: #{tpu_custom_call.1} parent=0 // pred_fallthru
    _
  // Predicated region
  $region6: #{tpu_custom_call.1} parent=0 // pred_check
    _
  $region7: #{tpu_custom_call.1} parent=0 // pred_check_branch
    %11 = sbr.rel (0) target = $region9
  $region8: #{tpu_custom_call.1} parent=0 // pred_region
    _
  $region9: #{tpu_custom_call.1} parent=0 // pred_fallthru
    _
  // Predicated region
  $region10: #{tpu_custom_call.1} parent=0 // pred_check
    _
  $region11: #{tpu_custom_call.1} parent=0 // pred_check_branch
    %13 = sbr.rel (0) target = $region13
  $region12: #{tpu_custom_call.1} parent=0 // pred_region
    _
  $region13: #{tpu_custom_call.1} parent=0 // pred_fallthru
    _
  %v14 = vld [vmem:[%s0] sm:$0x1]
  %v15 = vperm.slane %v14, 0
  %v16 = vlaneseq
  %v17 = vshrl.u32 %v16, 7
  %v18 = vadd.s32 %v17, 8
  %v19 = vadd.s32 %v17, 16
  %v20 = vld [vmem:[%s0 + $0x1] sm:$0x1]
  %v21 = vperm.slane %v20, 0
  %vm22 = vcmp.ge.s32.totalorder %v17, 5
  %vm23 = vcmp.ge.s32.totalorder %v18, 5
  %vm24 = vcmp.ge.s32.totalorder %v19, 5
  %v25 = vsel %vm22, %v21, %v15
  %v26 = vsel %vm23, %v21, %v15
  %v27 = vsel %vm24, %v21, %v15
  %v28 = vld [vmem:[%s0 + $0x2] sm:$0x1]
  %v29 = vperm.slane %v28, 0
  %vm30 = vcmp.ge.s32.totalorder %v17, 10
  %vm31 = vcmp.ge.s32.totalorder %v18, 10
  %vm32 = vcmp.ge.s32.totalorder %v19, 10
  %v33 = vsel %vm30, %v29, %v25
  %v34 = vsel %vm31, %v29, %v26
  %v35 = vsel %vm32, %v29, %v27
  %v36 = vld [vmem:[%s0 + $0x3] sm:$0x1]
  %v37 = vperm.slane %v36, 0
  %vm38 = vcmp.ge.s32.totalorder %v17, 15
  %vm39 = vcmp.ge.s32.totalorder %v18, 15
  %vm40 = vcmp.ge.s32.totalorder %v19, 15
  %v41 = vsel %vm38, %v37, %v33
  %v42 = vsel %vm39, %v37, %v34
  %v43 = vsel %vm40, %v37, %v35
  %v44 = vld [vmem:[%s1] sm:$0xff]
  %v45 = vld [vmem:[%s1 + $0x8] sm:$0xff]
  %v46 = vld [vmem:[%s1 + $0x10] sm:$0xf]
  %48 = vset.pattern.permute.xlu0 0
  %49 = vperm.xlu0 %48, %v44
  %v50 = vpop.permute.xlu0 %49
  %53 = vset.pattern.permute.xlu0 0
  %54 = vperm.xlu0 %53, %v45
  %v55 = vpop.permute.xlu0 %54
  %58 = vset.pattern.permute.xlu0 0
  %59 = vperm.xlu0 %58, %v46
  %v60 = vpop.permute.xlu0 %59
  %v62 = vsub.f32 %v41, %v50
  %v63 = vsub.f32 %v42, %v55
  %v64 = vsub.f32 %v43, %v60
  %v65 = vld [vmem:[%s2] sm:$0xff]
  %v66 = vld [vmem:[%s2 + $0x8] sm:$0xff]
  %v67 = vld [vmem:[%s2 + $0x10] sm:$0xf]
  %v68 = vmul.f32 %v62, %v62
  %v69 = vmul.f32 %v63, %v63
  %v70 = vmul.f32 %v64, %v64
  %72 = vset.pattern.permute.xlu0 0
  %73 = vperm.xlu0 %72, %v65
  %v74 = vpop.permute.xlu0 %73
  %77 = vset.pattern.permute.xlu0 0
  %78 = vperm.xlu0 %77, %v66
  %v79 = vpop.permute.xlu0 %78
  %82 = vset.pattern.permute.xlu0 0
  %83 = vperm.xlu0 %82, %v67
  %v84 = vpop.permute.xlu0 %83
  %v86 = vmul.f32 %v74, %v68
  %v87 = vmul.f32 %v79, %v69
  %v88 = vmul.f32 %v84, %v70
  %v89 = vmul.f32 %v86, 1.442695
  %v90 = vpow.pop %v89
  %v91 = vmul.f32 %v87, 1.442695
  %v92 = vpow.pop %v91
  %v93 = vmul.f32 %v88, 1.442695
  %v94 = vpow.pop %v93
  %vm95 = vcmask 130048
  %96 = vst.msk [vmem:[%s3] sm:$0xff] %vm95, %v90
  %97 = vst.msk [vmem:[%s3 + $0x8] sm:$0xff] %vm95, %v92
  %vm98 = vcmask 125952
  %99 = vst.msk [vmem:[%s3 + $0x10] sm:$0xf] %vm98, %v94
  // Predicated region
  $region14: #{tpu_custom_call.1} parent=0 // pred_check
    _
  $region15: #{tpu_custom_call.1} parent=0 // pred_check_branch
    %101 = sbr.rel (0) target = $region17
  $region16: #{tpu_custom_call.1} parent=0 // pred_region
    _
  $region17: #{tpu_custom_call.1} parent=0 // pred_fallthru
    _
  // Predicated region
  $region18: #{tpu_custom_call.1} parent=0 // pred_check
    _
  $region19: #{tpu_custom_call.1} parent=0 // pred_check_branch
    %103 = sbr.rel (0) target = $region21
  $region20: #{tpu_custom_call.1} parent=0 // pred_region
    _
  $region21: #{tpu_custom_call.1} parent=0 // pred_fallthru
    _

</llo_original>
